<compile_context>
chip_gen: v6e
topology: v6e:2x2x1
jax: 0.10.0
libtpu: 0.0.40
codegen_flags: <defaults>
</compile_context>

<pallas_src>
import jax
import jax.numpy as jnp
from jax.experimental import pallas as pl
from jax.experimental.pallas import tpu as pltpu


def mlp_kernel(x_ref, w1_ref, b1_ref, w2_ref, b2_ref, o_ref):
    ss, tn, f = x_ref.shape          # x block: (SS, TN, F), set dim outermost
    d = w1_ref.shape[1]

    # (SS, TN, F) -> (SS*TN, F): leading-dim merge.  TN is a multiple of the
    # sublane granularity, so every SS slab is tile-aligned -> free relabel.
    x = x_ref[...].reshape(ss * tn, f)

    # Linear1 + ReLU as one (SS*TN, F) @ (F, D) MXU GEMM, f32 accumulation.
    h = jnp.dot(x, w1_ref[...], preferred_element_type=jnp.float32) + b1_ref[...]
    h = jnp.maximum(h, 0.0)

    # Row-wise L2 normalize == torch.nn.functional.normalize(p=2, eps=1e-12):
    # 1/max(||h||, 1e-12) == rsqrt(max(||h||^2, 1e-24)); rsqrt runs on the EUP.
    ssum = jnp.sum(h * h, axis=-1, keepdims=True)
    h = h * jax.lax.rsqrt(jnp.maximum(ssum, 1e-24))

    # Product over the set dimension.  SS is the LEADING dim, so each half of
    # the pairwise tree is a whole stack of sublane-aligned (TN, D) tiles:
    # pure VALU multiplies, no sublane relayouts.
    p3 = h.reshape(ss, tn, d)
    if ss & (ss - 1) == 0:           # power-of-two set size: log2(SS) muls
        p = p3
        s = ss
        while s > 1:
            s //= 2
            p = p[:s] * p[s:]
        p = p[0]
    else:                            # generic: statically unrolled multiply
        p = p3[0]
        for i in range(1, ss):
            p = p * p3[i]

    # Output linear + numerically stable log_softmax over the last dim.
    y = jnp.dot(p, w2_ref[...], preferred_element_type=jnp.float32) + b2_ref[...]
    m = jnp.max(y, axis=-1, keepdims=True)
    lse = jnp.log(jnp.sum(jnp.exp(y - m), axis=-1, keepdims=True)) + m
    o_ref[...] = (y - lse).astype(o_ref.dtype)


def mlp_forward(x, w1, b1, w2, b2, *, tn_max=1024, use_bf16_inputs=True):
    N, SS, F_ = x.shape
    D = w1.shape[1]

    mult = 16 if use_bf16_inputs else 8      # sublane granularity of the x block

    def _round_up(a, m):
        return ((a + m - 1) // m) * m

    def _lane_pad(n):                        # VMEM lane padding of a last dim
        return _round_up(n, 128)

    # Per-generation VMEM budget (v7x: 64 MiB/TC, v5e/v6e: 128 MiB); raise the
    # scoped limit past the 16/32 MiB defaults but keep headroom for scratch.
    try:
        vmem_cap = int(pltpu.get_tpu_info().vmem_capacity_bytes)
    except Exception:
        vmem_cap = 64 * 1024 * 1024          # v7x per-TensorCore (the smallest)
    vmem_limit = max(32 << 20, min(vmem_cap - (16 << 20), 96 << 20))

    # Per-batch-row VMEM estimate (lane-padded): double-buffered x block,
    # double-buffered out block, ~4 live f32 (SS*TN, D) temporaries.
    x_bytes = 2 if use_bf16_inputs else 4
    per_row = (2 * SS * _lane_pad(F_) * x_bytes
               + 2 * _lane_pad(D) * 4
               + 4 * SS * _lane_pad(D) * 4)
    budget_rows = max(mult, int(0.6 * vmem_limit) // per_row)

    # Block size: big enough to amortize per-step overhead, capped by the VMEM
    # budget, and chosen so nblk >= 2 when N allows it (v7x megacore sharding).
    cand = min(tn_max, _round_up(pl.cdiv(N, 2), mult), budget_rows)
    tn = max(mult, (cand // mult) * mult)
    nblk = pl.cdiv(N, tn)
    n_pad = nblk * tn

    # Wrapper-side layout plumbing: set dim outermost, optional bf16 cast,
    # zero-pad the batch so every grid step is a full aligned block.
    xt = jnp.transpose(x, (1, 0, 2))                        # (SS, N, F)
    if use_bf16_inputs:
        xt = xt.astype(jnp.bfloat16)
        w1 = w1.astype(jnp.bfloat16)
    if n_pad != N:
        xt = jnp.pad(xt, ((0, 0), (0, n_pad - N), (0, 0)))

    b1r = b1.reshape(1, D).astype(jnp.float32)
    b2r = b2.reshape(1, D).astype(jnp.float32)
    w2f = w2.astype(jnp.float32)

    out = pl.pallas_call(
        mlp_kernel,
        out_shape=jax.ShapeDtypeStruct((n_pad, D), jnp.float32),
        grid=(nblk,),
        in_specs=[
            # x: one (SS, TN, F) slab per grid step (set dim outermost).
            pl.BlockSpec((SS, tn, F_), lambda n: (0, n, 0)),
            # Weights / biases: constant block index -> resident in VMEM.
            pl.BlockSpec((F_, D), lambda n: (0, 0)),
            pl.BlockSpec((1, D), lambda n: (0, 0)),
            pl.BlockSpec((D, D), lambda n: (0, 0)),
            pl.BlockSpec((1, D), lambda n: (0, 0)),
        ],
        out_specs=pl.BlockSpec((tn, D), lambda n: (n, 0)),
        compiler_params=pltpu.CompilerParams(
            dimension_semantics=("parallel",),
            vmem_limit_bytes=int(vmem_limit),
        ),
    )(xt, w1, b1r, w2f, b2r)

    return out[:N]


def mlp_reference(x, w1, b1, w2, b2):
    N, SS, F_ = x.shape
    h = jnp.maximum(x.reshape(-1, F_) @ w1 + b1, 0.0)
    norm = jnp.sqrt(jnp.sum(h * h, axis=-1, keepdims=True))
    h = h / jnp.maximum(norm, 1e-12)
    p = jnp.prod(h.reshape(N, SS, -1), axis=1)
    y = p @ w2 + b2
    return jax.nn.log_softmax(y, axis=-1)


if __name__ == "__main__":
    # Shapes consistent with the forward: x is (N, SS, F); input_dim=16, output_dim=32.
    N, SS, F_, D = 2, 8, 16, 32

    key = jax.random.PRNGKey(0)
    kx, kw1, kb1, kw2, kb2 = jax.random.split(key, 5)

    x = jax.random.normal(kx, (N, SS, F_), dtype=jnp.float32)

    # Deterministic PyTorch-style uniform(-1/sqrt(fan_in), 1/sqrt(fan_in)) init.
    bound1 = 1.0 / (F_ ** 0.5)
    w1 = jax.random.uniform(kw1, (F_, D), jnp.float32, -bound1, bound1)
    b1 = jax.random.uniform(kb1, (D,), jnp.float32, -bound1, bound1)
    bound2 = 1.0 / (D ** 0.5)
    w2 = jax.random.uniform(kw2, (D, D), jnp.float32, -bound2, bound2)
    b2 = jax.random.uniform(kb2, (D,), jnp.float32, -bound2, bound2)

    # 1) Exact f32 path, tiny batch (single block), tight tolerance.
    out = mlp_forward(x, w1, b1, w2, b2, use_bf16_inputs=False)
    jax.block_until_ready(out)
    ref = mlp_reference(x, w1, b1, w2, b2)
    assert out.shape == (N, D)
    assert jnp.allclose(out, ref, atol=2e-5, rtol=2e-5), "mismatch vs reference (f32)"

    # 2) Exact f32 path, multi-block + batch padding (3 blocks of TN=8, N_pad=24).
    N2 = 20
    x2 = jax.random.normal(jax.random.PRNGKey(1), (N2, SS, F_), dtype=jnp.float32)
    out2 = mlp_forward(x2, w1, b1, w2, b2, tn_max=8, use_bf16_inputs=False)
    jax.block_until_ready(out2)
    ref2 = mlp_reference(x2, w1, b1, w2, b2)
    assert out2.shape == (N2, D)
    assert jnp.allclose(out2, ref2, atol=2e-5, rtol=2e-5), "mismatch vs reference (blocked f32)"

    # 3) Default perf path: bf16 inputs, 2 blocks (megacore-friendly), padded batch.
    #    Compare against a reference fed the same bf16-rounded inputs (accumulation
    #    in the kernel stays f32); loose tolerance absorbs backend matmul precision.
    N3 = 48
    x3 = jax.random.normal(jax.random.PRNGKey(2), (N3, SS, F_), dtype=jnp.float32)
    out3 = mlp_forward(x3, w1, b1, w2, b2)
    jax.block_until_ready(out3)
    ref3 = mlp_reference(x3.astype(jnp.bfloat16).astype(jnp.float32),
                         w1.astype(jnp.bfloat16).astype(jnp.float32), b1, w2, b2)
    assert out3.shape == (N3, D)
    assert jnp.allclose(out3, ref3, atol=1e-3, rtol=1e-3), "mismatch vs reference (bf16 inputs)"

    print("KERNEL_OK")
</pallas_src>

<mosaic_0001>
module attributes {stable_mosaic.version = 11 : i64} {
  func.func @mlp_kernel(%arg0: i32, %arg1: memref<8x8x16xf32, #tpu.memory_space<vmem>>, %arg2: memref<16x32xf32, #tpu.memory_space<vmem>>, %arg3: memref<1x32xf32, #tpu.memory_space<vmem>>, %arg4: memref<32x32xf32, #tpu.memory_space<vmem>>, %arg5: memref<1x32xf32, #tpu.memory_space<vmem>>, %arg6: memref<8x32xf32, #tpu.memory_space<vmem>>) attributes {dimension_semantics = [#tpu.dimension_semantics<parallel>], iteration_bounds = array<i64: 1>, scalar_prefetch = 0 : i64, scratch_operands = 0 : i64, tpu.core_type = #tpu.core_type<tc>, window_params = [{transform_indices = @transform_0, window_bounds = array<i64: 8, 8, 16>}, {pipeline_mode = #tpu.pipeline_mode<synchronous>, transform_indices = @transform_1, window_bounds = array<i64: 16, 32>}, {pipeline_mode = #tpu.pipeline_mode<synchronous>, transform_indices = @transform_2, window_bounds = array<i64: 1, 32>}, {pipeline_mode = #tpu.pipeline_mode<synchronous>, transform_indices = @transform_3, window_bounds = array<i64: 32, 32>}, {pipeline_mode = #tpu.pipeline_mode<synchronous>, transform_indices = @transform_4, window_bounds = array<i64: 1, 32>}, {transform_indices = @transform_5, window_bounds = array<i64: 8, 32>}]} {
    %c0 = arith.constant 0 : index
    %c0_0 = arith.constant 0 : index
    %c0_1 = arith.constant 0 : index
    %0 = vector.load %arg1[%c0, %c0_0, %c0_1] : memref<8x8x16xf32, #tpu.memory_space<vmem>>, vector<8x8x16xf32>
    %1 = vector.shape_cast %0 : vector<8x8x16xf32> to vector<64x16xf32>
    %c0_2 = arith.constant 0 : index
    %c0_3 = arith.constant 0 : index
    %2 = vector.load %arg2[%c0_2, %c0_3] : memref<16x32xf32, #tpu.memory_space<vmem>>, vector<16x32xf32>
    %cst = arith.constant dense<0.000000e+00> : vector<64x32xf32>
    %3 = tpu.matmul %1, %2, %cst {dimension_numbers = #tpu.dot_dimension_numbers<[1], [0], [0], [1], [0, 0, 1, 1], [], []>} : vector<64x16xf32>, vector<16x32xf32>, vector<64x32xf32> -> vector<64x32xf32>
    %c0_4 = arith.constant 0 : index
    %c0_5 = arith.constant 0 : index
    %4 = vector.load %arg3[%c0_4, %c0_5] : memref<1x32xf32, #tpu.memory_space<vmem>>, vector<1x32xf32>
    %5 = vector.broadcast %4 : vector<1x32xf32> to vector<64x32xf32>
    %6 = arith.addf %3, %5 : vector<64x32xf32>
    %cst_6 = arith.constant 0.000000e+00 : f32
    %7 = vector.broadcast %cst_6 : f32 to vector<64x32xf32>
    %8 = arith.maximumf %6, %7 : vector<64x32xf32>
    %9 = arith.mulf %8, %8 : vector<64x32xf32>
    %cst_7 = arith.constant dense<0.000000e+00> : vector<64xf32>
    %10 = vector.multi_reduction <add>, %9, %cst_7 [1] : vector<64x32xf32> to vector<64xf32>
    %11 = vector.shape_cast %10 : vector<64xf32> to vector<64x1xf32>
    %cst_8 = arith.constant 1.000000e-24 : f32
    %12 = vector.broadcast %cst_8 : f32 to vector<64x1xf32>
    %13 = arith.maximumf %11, %12 : vector<64x1xf32>
    %14 = math.rsqrt %13 : vector<64x1xf32>
    %15 = vector.broadcast %14 : vector<64x1xf32> to vector<64x32xf32>
    %16 = arith.mulf %8, %15 : vector<64x32xf32>
    %17 = vector.shape_cast %16 : vector<64x32xf32> to vector<8x8x32xf32>
    %18 = vector.extract_strided_slice %17 {offsets = [0, 0, 0], sizes = [4, 8, 32], strides = [1, 1, 1]} : vector<8x8x32xf32> to vector<4x8x32xf32>
    %19 = vector.extract_strided_slice %17 {offsets = [4, 0, 0], sizes = [4, 8, 32], strides = [1, 1, 1]} : vector<8x8x32xf32> to vector<4x8x32xf32>
    %20 = arith.mulf %18, %19 : vector<4x8x32xf32>
    %21 = vector.extract_strided_slice %20 {offsets = [0, 0, 0], sizes = [2, 8, 32], strides = [1, 1, 1]} : vector<4x8x32xf32> to vector<2x8x32xf32>
    %22 = vector.extract_strided_slice %20 {offsets = [2, 0, 0], sizes = [2, 8, 32], strides = [1, 1, 1]} : vector<4x8x32xf32> to vector<2x8x32xf32>
    %23 = arith.mulf %21, %22 : vector<2x8x32xf32>
    %24 = vector.extract_strided_slice %23 {offsets = [0, 0, 0], sizes = [1, 8, 32], strides = [1, 1, 1]} : vector<2x8x32xf32> to vector<1x8x32xf32>
    %25 = vector.extract_strided_slice %23 {offsets = [1, 0, 0], sizes = [1, 8, 32], strides = [1, 1, 1]} : vector<2x8x32xf32> to vector<1x8x32xf32>
    %26 = arith.mulf %24, %25 : vector<1x8x32xf32>
    %27 = vector.shape_cast %26 : vector<1x8x32xf32> to vector<8x32xf32>
    %c0_9 = arith.constant 0 : index
    %c0_10 = arith.constant 0 : index
    %28 = vector.load %arg4[%c0_9, %c0_10] : memref<32x32xf32, #tpu.memory_space<vmem>>, vector<32x32xf32>
    %cst_11 = arith.constant dense<0.000000e+00> : vector<8x32xf32>
    %29 = tpu.matmul %27, %28, %cst_11 {dimension_numbers = #tpu.dot_dimension_numbers<[1], [0], [0], [1], [0, 0, 1, 1], [], []>} : vector<8x32xf32>, vector<32x32xf32>, vector<8x32xf32> -> vector<8x32xf32>
    %c0_12 = arith.constant 0 : index
    %c0_13 = arith.constant 0 : index
    %30 = vector.load %arg5[%c0_12, %c0_13] : memref<1x32xf32, #tpu.memory_space<vmem>>, vector<1x32xf32>
    %31 = vector.broadcast %30 : vector<1x32xf32> to vector<8x32xf32>
    %32 = arith.addf %29, %31 : vector<8x32xf32>
    %cst_14 = arith.constant dense<0xFF800000> : vector<8xf32>
    %33 = vector.multi_reduction <maximumf>, %32, %cst_14 [1] : vector<8x32xf32> to vector<8xf32>
    %34 = vector.shape_cast %33 : vector<8xf32> to vector<8x1xf32>
    %35 = vector.broadcast %34 : vector<8x1xf32> to vector<8x32xf32>
    %36 = arith.subf %32, %35 : vector<8x32xf32>
    %37 = math.exp %36 : vector<8x32xf32>
    %cst_15 = arith.constant dense<0.000000e+00> : vector<8xf32>
    %38 = vector.multi_reduction <add>, %37, %cst_15 [1] : vector<8x32xf32> to vector<8xf32>
    %39 = vector.shape_cast %38 : vector<8xf32> to vector<8x1xf32>
    %40 = math.log %39 : vector<8x1xf32>
    %41 = arith.addf %40, %34 : vector<8x1xf32>
    %42 = vector.broadcast %41 : vector<8x1xf32> to vector<8x32xf32>
    %43 = arith.subf %32, %42 : vector<8x32xf32>
    %c0_16 = arith.constant 0 : index
    %c0_17 = arith.constant 0 : index
    %44 = vector.load %arg6[%c0_16, %c0_17] : memref<8x32xf32, #tpu.memory_space<vmem>>, vector<8x32xf32>
    tpu.vector_store %arg6[%c0_16, %c0_17], %43 {strides = array<i32>} : memref<8x32xf32, #tpu.memory_space<vmem>>, vector<8x32xf32>,
    return
  }
  func.func @transform_0(%arg0: i32) -> (i32, i32, i32) {
    %c0_i32 = arith.constant 0 : i32
    %c0_i32_0 = arith.constant 0 : i32
    %c0_i32_1 = arith.constant 0 : i32
    return %c0_i32, %arg0, %c0_i32_0 : i32, i32, i32
  }
  func.func @transform_1(%arg0: i32) -> (i32, i32) {
    %c0_i32 = arith.constant 0 : i32
    %c0_i32_0 = arith.constant 0 : i32
    %c0_i32_1 = arith.constant 0 : i32
    return %c0_i32, %c0_i32_0 : i32, i32
  }
  func.func @transform_2(%arg0: i32) -> (i32, i32) {
    %c0_i32 = arith.constant 0 : i32
    %c0_i32_0 = arith.constant 0 : i32
    %c0_i32_1 = arith.constant 0 : i32
    return %c0_i32, %c0_i32_0 : i32, i32
  }
  func.func @transform_3(%arg0: i32) -> (i32, i32) {
    %c0_i32 = arith.constant 0 : i32
    %c0_i32_0 = arith.constant 0 : i32
    %c0_i32_1 = arith.constant 0 : i32
    return %c0_i32, %c0_i32_0 : i32, i32
  }
  func.func @transform_4(%arg0: i32) -> (i32, i32) {
    %c0_i32 = arith.constant 0 : i32
    %c0_i32_0 = arith.constant 0 : i32
    %c0_i32_1 = arith.constant 0 : i32
    return %c0_i32, %c0_i32_0 : i32, i32
  }
  func.func @transform_5(%arg0: i32) -> (i32, i32) {
    %c0_i32 = arith.constant 0 : i32
    %c0_i32_0 = arith.constant 0 : i32
    return %arg0, %c0_i32 : i32, i32
  }
}

</mosaic_0001>

<llo_original>
// kernel: tpu_custom_call.1
$region0: #{tpu_custom_call.1}
  #allocation0 [shape = 'u32[]', space=smem, size = 0x4, offset = 0x4, fixed_abs, tag = 'smem constant byte address 0x4 - core index']
  #allocation1 [shape = 'u32[144,128]{1,0:T(1,128)}', space=vmem, size = 0x12000, scoped, tag = 'internal scratch']
  %s0 = inlined_call_operand.hbm [shape: f32[8,8,16], index: 0, kind: input, shape index: {}]
  %s1 = inlined_call_operand.hbm [shape: f32[16,32], index: 1, kind: input, shape index: {}]
  %s2 = inlined_call_operand.vmem [shape: f32[1,32], index: 2, kind: input, shape index: {}]
  %s3 = inlined_call_operand.hbm [shape: f32[32,32], index: 3, kind: input, shape index: {}]
  %s4 = inlined_call_operand.vmem [shape: f32[1,32], index: 4, kind: input, shape index: {}]
  %s5 = inlined_call_operand.hbm [shape: f32[8,32], index: 5, kind: output, shape index: {}]
  %s6 = sld [smem:[#allocation0]]
  $region42: #{tpu_custom_call.1} parent=0
    _
  %s8 = ssub.s32 1, %s6
  %s9 = scalar_select 0, %s8, %s6
  $region1: #{tpu_custom_call.1} parent=0
    #allocation2 [shape = 'u8[32768]{0}', space=vmem, size = 0x8000, scoped, tag = 'input window, operand 0, single buffered']
    #allocation3 [shape = 's32[1]{0}', space=sflag, size = 0x4, scoped, tag = 'scoped memory for tpu_custom_call.1']
    #allocation4 [shape = 's32[1]{0}', space=sflag, size = 0x4, scoped, tag = 'scoped memory for tpu_custom_call.1']
    #allocation5 [shape = 'u8[8192]{0}', space=vmem, size = 0x2000, scoped, tag = 'input window, operand 1, single buffered']
    #allocation6 [shape = 's32[1]{0}', space=sflag, size = 0x4, scoped, tag = 'scoped memory for tpu_custom_call.1']
    #allocation7 [shape = 'u8[16384]{0}', space=vmem, size = 0x4000, scoped, tag = 'input window, operand 3, single buffered']
    #allocation8 [shape = 'u8[4096]{0}', space=vmem, size = 0x1000, scoped, tag = 'output window, operand 0, single buffered']
    %10 = vsyncpa [#allocation3], 0
    %11 = vsyncpa [#allocation6], 0
    %12 = vsyncpa [#allocation4], 0
    // Predicated region
    $region2: #{tpu_custom_call.1} parent=1 // pred_check
      _
    $region3: #{tpu_custom_call.1} parent=1 // pred_check_branch
      %14 = sbr.rel (0) target = $region5
    $region4: #{tpu_custom_call.1} parent=1 // pred_region
      %s16 = ssub.s32 1024, 1024
      %17 = vsyncadd [#allocation3], %s16
      %s18 = sshll.u32 [#allocation2], 4
      %s19 = int_to_ptr.vmem [resolvable:$true] %s18
      %24 = dma.hbm_to_vmem [thread:$0]  %s0, 1024, %s19, [#allocation3], 128, 128, 8
    $region5: #{tpu_custom_call.1} parent=1 // pred_fallthru
      _
    // Predicated region
    $region6: #{tpu_custom_call.1} parent=1 // pred_check
      _
    $region7: #{tpu_custom_call.1} parent=1 // pred_check_branch
      %26 = sbr.rel (0) target = $region9
    $region8: #{tpu_custom_call.1} parent=1 // pred_region
      %s28 = ssub.s32 256, 256
      %29 = vsyncadd [#allocation6], %s28
      %s30 = sshll.u32 [#allocation5], 4
      %s31 = int_to_ptr.vmem [resolvable:$true] %s30
      %36 = dma.hbm_to_vmem [thread:$0]  %s1, 256, %s31, [#allocation6], 128, 128, 8
    $region9: #{tpu_custom_call.1} parent=1 // pred_fallthru
      _
    // Predicated region
    $region10: #{tpu_custom_call.1} parent=1 // pred_check
      _
    $region11: #{tpu_custom_call.1} parent=1 // pred_check_branch
      %38 = sbr.rel (0) target = $region13
    $region12: #{tpu_custom_call.1} parent=1 // pred_region
      _
    $region13: #{tpu_custom_call.1} parent=1 // pred_fallthru
      _
    // Predicated region
    $region14: #{tpu_custom_call.1} parent=1 // pred_check
      _
    $region15: #{tpu_custom_call.1} parent=1 // pred_check_branch
      %40 = sbr.rel (0) target = $region17
    $region16: #{tpu_custom_call.1} parent=1 // pred_region
      %s42 = ssub.s32 512, 512
      %43 = vsyncadd [#allocation6], %s42
      %s44 = sshll.u32 [#allocation7], 4
      %s45 = int_to_ptr.vmem [resolvable:$true] %s44
      %50 = dma.hbm_to_vmem [thread:$0]  %s3, 512, %s45, [#allocation6], 128, 128, 8
    $region17: #{tpu_custom_call.1} parent=1 // pred_fallthru
      _
    // Predicated region
    $region18: #{tpu_custom_call.1} parent=1 // pred_check
      _
    $region19: #{tpu_custom_call.1} parent=1 // pred_check_branch
      %52 = sbr.rel (0) target = $region21
    $region20: #{tpu_custom_call.1} parent=1 // pred_region
      _
    $region21: #{tpu_custom_call.1} parent=1 // pred_fallthru
      _
    // Predicated region
    $region22: #{tpu_custom_call.1} parent=1 // pred_check
      _
    $region23: #{tpu_custom_call.1} parent=1 // pred_check_branch
      %54 = sbr.rel (0) target = $region25
    $region24: #{tpu_custom_call.1} parent=1 // pred_region
      %55 = dma.done [#allocation3], 1024
    $region25: #{tpu_custom_call.1} parent=1 // pred_fallthru
      _
    // Predicated region
    $region26: #{tpu_custom_call.1} parent=1 // pred_check
      _
    $region27: #{tpu_custom_call.1} parent=1 // pred_check_branch
      %57 = sbr.rel (0) target = $region29
    $region28: #{tpu_custom_call.1} parent=1 // pred_region
      %58 = dma.done [#allocation6], 256
    $region29: #{tpu_custom_call.1} parent=1 // pred_fallthru
      _
    // Predicated region
    $region30: #{tpu_custom_call.1} parent=1 // pred_check
      _
    $region31: #{tpu_custom_call.1} parent=1 // pred_check_branch
      %60 = sbr.rel (0) target = $region33
    $region32: #{tpu_custom_call.1} parent=1 // pred_region
      %61 = dma.done [#allocation6], 512
    $region33: #{tpu_custom_call.1} parent=1 // pred_fallthru
      _
    %v62 = vld [vmem:[#allocation2] sm:$0xff]
    %v63 = vld [vmem:[#allocation2 + $0x8] sm:$0xff]
    %v64 = vld [vmem:[#allocation2 + $0x10] sm:$0xff]
    %v65 = vld [vmem:[#allocation2 + $0x18] sm:$0xff]
    %v66 = vld [vmem:[#allocation2 + $0x20] sm:$0xff]
    %v67 = vld [vmem:[#allocation2 + $0x28] sm:$0xff]
    %v68 = vld [vmem:[#allocation2 + $0x30] sm:$0xff]
    %v69 = vld [vmem:[#allocation2 + $0x38] sm:$0xff]
    %v70 = vld [vmem:[#allocation5] sm:$0xff]
    %v71 = vld [vmem:[#allocation5 + $0x8] sm:$0xff]
    %v72 = vld [vmem:[%s2] sm:$0x1]
    %v74 = vlaneseq
    %v75 = vshrl.u32 %v74, 7
    %v76 = vsub.s32 0, %v75
    %v77 = vrot.slane %v72, %v76
    %vm79 = vcmask 130048
    %v81 = vsel %vm79, %v62, 0
    %v84 = vsel %vm79, %v63, 0
    %v87 = vsel %vm79, %v64, 0
    %v90 = vsel %vm79, %v65, 0
    %v93 = vsel %vm79, %v66, 0
    %v96 = vsel %vm79, %v67, 0
    %v99 = vsel %vm79, %v68, 0
    %v102 = vsel %vm79, %v69, 0
    %104 = vmatprep.subr.mxu0 0.0
    %105 = vmatpush1.msra.mxu0 0.0
    %106 = vmatprep.subr.mxu0 0.0
    %107 = vmatpush1.msra.mxu0 0.0
    %108 = vmatprep.subr.mxu0 0.0
    %109 = vmatpush1.msra.mxu0 0.0
    %110 = vmatprep.subr.mxu0 0.0
    %111 = vmatpush1.msra.mxu0 0.0
    %112 = vmatprep.subr.mxu0 0.0
    %113 = vmatpush1.msra.mxu0 0.0
    %114 = vmatprep.subr.mxu0 0.0
    %115 = vmatpush1.msra.mxu0 0.0
    %116 = vmatprep.subr.mxu0 0.0
    %117 = vmatpush1.msra.mxu0 0.0
    %118 = vmatprep.subr.mxu0 0.0
    %119 = vmatpush1.msra.mxu0 0.0
    %120 = vmatprep.subr.mxu0 0.0
    %121 = vmatpush1.msra.mxu0 0.0
    %122 = vmatprep.subr.mxu0 0.0
    %123 = vmatpush1.msra.mxu0 0.0
    %124 = vmatprep.subr.mxu0 0.0
    %125 = vmatpush1.msra.mxu0 0.0
    %126 = vmatprep.subr.mxu0 0.0
    %127 = vmatpush1.msra.mxu0 0.0
    %128 = vmatprep.subr.mxu0 0.0
    %129 = vmatpush1.msra.mxu0 0.0
    %130 = vmatprep.subr.mxu0 0.0
    %131 = vmatpush1.msra.mxu0 0.0
    %132 = vmatprep.subr.mxu0 0.0
    %133 = vmatpush1.msra.mxu0 %v71
    %134 = vmatprep.subr.mxu0 0.0
    %135 = vmatpush1.msra.mxu0 %v70
    %136 = vmatprep.subr.mxu0 0.0
    %137 = vmatpush2.msra.mxu0 0.0
    %138 = vmatprep.subr.mxu0 0.0
    %139 = vmatpush2.msra.mxu0 0.0
    %140 = vmatprep.subr.mxu0 0.0
    %141 = vmatpush2.msra.mxu0 0.0
    %142 = vmatprep.subr.mxu0 0.0
    %143 = vmatpush2.msra.mxu0 0.0
    %144 = vmatprep.subr.mxu0 0.0
    %145 = vmatpush2.msra.mxu0 0.0
    %146 = vmatprep.subr.mxu0 0.0
    %147 = vmatpush2.msra.mxu0 0.0
    %148 = vmatprep.subr.mxu0 0.0
    %149 = vmatpush2.msra.mxu0 0.0
    %150 = vmatprep.subr.mxu0 0.0
    %151 = vmatpush2.msra.mxu0 0.0
    %152 = vmatprep.subr.mxu0 0.0
    %153 = vmatpush2.msra.mxu0 0.0
    %154 = vmatprep.subr.mxu0 0.0
    %155 = vmatpush2.msra.mxu0 0.0
    %156 = vmatprep.subr.mxu0 0.0
    %157 = vmatpush2.msra.mxu0 0.0
    %158 = vmatprep.subr.mxu0 0.0
    %159 = vmatpush2.msra.mxu0 0.0
    %160 = vmatprep.subr.mxu0 0.0
    %161 = vmatpush2.msra.mxu0 0.0
    %162 = vmatprep.subr.mxu0 0.0
    %163 = vmatpush2.msra.mxu0 0.0
    %164 = vmatprep.subr.mxu0 0.0
    %165 = vmatpush2.msra.mxu0 0.0
    %166 = vmatprep.subr.mxu0 0.0
    %167 = vmatpush2.msra.mxu0 0.0
    %168 = vmatprep.mubr.f32.mxu0 0.0
    %169 = vmatmul.mubr.f32.gmra.mxu0 %v81
    %v170 = vpop.f32.mrf.mxu0
    %v171 = vadd.f32 %v77, %v170
    %v172 = vpop.f32.mrf.mxu0
    %173 = vmatprep.mubr.f32.mxu0 0.0
    %174 = vmatmul.mubr.f32.gmra.mxu0 %v84
    %v175 = vpop.f32.mrf.mxu0
    %v176 = vadd.f32 %v77, %v175
    %v177 = vpop.f32.mrf.mxu0
    %178 = vmatprep.mubr.f32.mxu0 0.0
    %179 = vmatmul.mubr.f32.gmra.mxu0 %v87
    %v180 = vpop.f32.mrf.mxu0
    %v181 = vadd.f32 %v77, %v180
    %v182 = vpop.f32.mrf.mxu0
    %183 = vmatprep.mubr.f32.mxu0 0.0
    %184 = vmatmul.mubr.f32.gmra.mxu0 %v90
    %v185 = vpop.f32.mrf.mxu0
    %v186 = vadd.f32 %v77, %v185
    %v187 = vpop.f32.mrf.mxu0
    %188 = vmatprep.mubr.f32.mxu0 0.0
    %189 = vmatmul.mubr.f32.gmra.mxu0 %v93
    %v190 = vpop.f32.mrf.mxu0
    %v191 = vadd.f32 %v77, %v190
    %v192 = vpop.f32.mrf.mxu0
    %193 = vmatprep.mubr.f32.mxu0 0.0
    %194 = vmatmul.mubr.f32.gmra.mxu0 %v96
    %v195 = vpop.f32.mrf.mxu0
    %v196 = vadd.f32 %v77, %v195
    %v197 = vpop.f32.mrf.mxu0
    %198 = vmatprep.mubr.f32.mxu0 0.0
    %199 = vmatmul.mubr.f32.gmra.mxu0 %v99
    %v200 = vpop.f32.mrf.mxu0
    %v201 = vadd.f32 %v77, %v200
    %v202 = vpop.f32.mrf.mxu0
    %203 = vmatprep.mubr.f32.mxu0 0.0
    %204 = vmatmul.mubr.f32.gmra.mxu0 %v102
    %v205 = vpop.f32.mrf.mxu0
    %v206 = vadd.f32 %v77, %v205
    %v207 = vpop.f32.mrf.mxu0
    %208 = vdwg.mxu0
    %v209 = vmax.f32 %v171, 0.0
    %v210 = vmax.f32 %v176, 0.0
    %v211 = vmax.f32 %v181, 0.0
    %v212 = vmax.f32 %v186, 0.0
    %v213 = vmax.f32 %v191, 0.0
    %v214 = vmax.f32 %v196, 0.0
    %v215 = vmax.f32 %v201, 0.0
    %v216 = vmax.f32 %v206, 0.0
    %v217 = vmul.f32 %v209, %v209
    %v218 = vmul.f32 %v210, %v210
    %v219 = vmul.f32 %v211, %v211
    %v220 = vmul.f32 %v212, %v212
    %v221 = vmul.f32 %v213, %v213
    %v222 = vmul.f32 %v214, %v214
    %v223 = vmul.f32 %v215, %v215
    %v224 = vmul.f32 %v216, %v216
    %vm225 = vcmask 261120
    %v226 = vsel %vm225, %v217, 0.0
    %227 = vadd.xlane.f32.xlu0 %v226
    %v228 = vpop.xlane.xlu0 %227
    %v229 = vsel %vm225, %v218, 0.0
    %230 = vadd.xlane.f32.xlu0 %v229
    %v231 = vpop.xlane.xlu0 %230
    %v232 = vsel %vm225, %v219, 0.0
    %233 = vadd.xlane.f32.xlu0 %v232
    %v234 = vpop.xlane.xlu0 %233
    %v235 = vsel %vm225, %v220, 0.0
    %236 = vadd.xlane.f32.xlu0 %v235
    %v237 = vpop.xlane.xlu0 %236
    %v238 = vsel %vm225, %v221, 0.0
    %239 = vadd.xlane.f32.xlu0 %v238
    %v240 = vpop.xlane.xlu0 %239
    %v241 = vsel %vm225, %v222, 0.0
    %242 = vadd.xlane.f32.xlu0 %v241
    %v243 = vpop.xlane.xlu0 %242
    %v244 = vsel %vm225, %v223, 0.0
    %245 = vadd.xlane.f32.xlu0 %v244
    %v246 = vpop.xlane.xlu0 %245
    %v247 = vsel %vm225, %v224, 0.0
    %248 = vadd.xlane.f32.xlu0 %v247
    %v249 = vpop.xlane.xlu0 %248
    %v250 = vmax.f32 %v228, 1e-24
    %v251 = vmax.f32 %v231, 1e-24
    %v252 = vmax.f32 %v234, 1e-24
    %v253 = vmax.f32 %v237, 1e-24
    %v254 = vmax.f32 %v240, 1e-24
    %v255 = vmax.f32 %v243, 1e-24
    %v256 = vmax.f32 %v246, 1e-24
    %v257 = vmax.f32 %v249, 1e-24
    %v258 = vrsqrt.pop %v250
    %v259 = vrsqrt.pop %v251
    %v260 = vrsqrt.pop %v252
    %v261 = vrsqrt.pop %v253
    %v262 = vrsqrt.pop %v254
    %v263 = vrsqrt.pop %v255
    %v264 = vrsqrt.pop %v256
    %v265 = vrsqrt.pop %v257
    %v266 = vmul.f32 %v209, %v258
    %v267 = vmul.f32 %v210, %v259
    %v268 = vmul.f32 %v211, %v260
    %v269 = vmul.f32 %v212, %v261
    %v270 = vmul.f32 %v213, %v262
    %v271 = vmul.f32 %v214, %v263
    %v272 = vmul.f32 %v215, %v264
    %v273 = vmul.f32 %v216, %v265
    %v274 = vmul.f32 %v266, %v270
    %v275 = vmul.f32 %v267, %v271
    %v276 = vmul.f32 %v268, %v272
    %v277 = vmul.f32 %v269, %v273
    %v278 = vmul.f32 %v274, %v276
    %v279 = vmul.f32 %v275, %v277
    %v280 = vmul.f32 %v278, %v279
    %v281 = vld [vmem:[#allocation7] sm:$0xff]
    %v282 = vld [vmem:[#allocation7 + $0x8] sm:$0xff]
    %v283 = vld [vmem:[#allocation7 + $0x10] sm:$0xff]
    %v284 = vld [vmem:[#allocation7 + $0x18] sm:$0xff]
    %v285 = vld [vmem:[%s4] sm:$0x1]
    %v287 = vlaneseq
    %v288 = vshrl.u32 %v287, 7
    %v289 = vsub.s32 0, %v288
    %v290 = vrot.slane %v285, %v289
    %v293 = vsel %vm225, %v280, 0
    %295 = vmatprep.subr.mxu0 0.0
    %296 = vmatpush1.msra.mxu0 0.0
    %297 = vmatprep.subr.mxu0 0.0
    %298 = vmatpush1.msra.mxu0 0.0
    %299 = vmatprep.subr.mxu0 0.0
    %300 = vmatpush1.msra.mxu0 0.0
    %301 = vmatprep.subr.mxu0 0.0
    %302 = vmatpush1.msra.mxu0 0.0
    %303 = vmatprep.subr.mxu0 0.0
    %304 = vmatpush1.msra.mxu0 0.0
    %305 = vmatprep.subr.mxu0 0.0
    %306 = vmatpush1.msra.mxu0 0.0
    %307 = vmatprep.subr.mxu0 0.0
    %308 = vmatpush1.msra.mxu0 0.0
    %309 = vmatprep.subr.mxu0 0.0
    %310 = vmatpush1.msra.mxu0 0.0
    %311 = vmatprep.subr.mxu0 0.0
    %312 = vmatpush1.msra.mxu0 0.0
    %313 = vmatprep.subr.mxu0 0.0
    %314 = vmatpush1.msra.mxu0 0.0
    %315 = vmatprep.subr.mxu0 0.0
    %316 = vmatpush1.msra.mxu0 0.0
    %317 = vmatprep.subr.mxu0 0.0
    %318 = vmatpush1.msra.mxu0 0.0
    %319 = vmatprep.subr.mxu0 0.0
    %320 = vmatpush1.msra.mxu0 %v284
    %321 = vmatprep.subr.mxu0 0.0
    %322 = vmatpush1.msra.mxu0 %v283
    %323 = vmatprep.subr.mxu0 0.0
    %324 = vmatpush1.msra.mxu0 %v282
    %325 = vmatprep.subr.mxu0 0.0
    %326 = vmatpush1.msra.mxu0 %v281
    %327 = vmatprep.subr.mxu0 0.0
    %328 = vmatpush2.msra.mxu0 0.0
    %329 = vmatprep.subr.mxu0 0.0
    %330 = vmatpush2.msra.mxu0 0.0
    %331 = vmatprep.subr.mxu0 0.0
    %332 = vmatpush2.msra.mxu0 0.0
    %333 = vmatprep.subr.mxu0 0.0
    %334 = vmatpush2.msra.mxu0 0.0
    %335 = vmatprep.subr.mxu0 0.0
    %336 = vmatpush2.msra.mxu0 0.0
    %337 = vmatprep.subr.mxu0 0.0
    %338 = vmatpush2.msra.mxu0 0.0
    %339 = vmatprep.subr.mxu0 0.0
    %340 = vmatpush2.msra.mxu0 0.0
    %341 = vmatprep.subr.mxu0 0.0
    %342 = vmatpush2.msra.mxu0 0.0
    %343 = vmatprep.subr.mxu0 0.0
    %344 = vmatpush2.msra.mxu0 0.0
    %345 = vmatprep.subr.mxu0 0.0
    %346 = vmatpush2.msra.mxu0 0.0
    %347 = vmatprep.subr.mxu0 0.0
    %348 = vmatpush2.msra.mxu0 0.0
    %349 = vmatprep.subr.mxu0 0.0
    %350 = vmatpush2.msra.mxu0 0.0
    %351 = vmatprep.subr.mxu0 0.0
    %352 = vmatpush2.msra.mxu0 0.0
    %353 = vmatprep.subr.mxu0 0.0
    %354 = vmatpush2.msra.mxu0 0.0
    %355 = vmatprep.subr.mxu0 0.0
    %356 = vmatpush2.msra.mxu0 0.0
    %357 = vmatprep.subr.mxu0 0.0
    %358 = vmatpush2.msra.mxu0 0.0
    %359 = vmatprep.mubr.f32.mxu0 0.0
    %360 = vmatmul.mubr.f32.gmra.mxu0 %v293
    %v361 = vpop.f32.mrf.mxu0
    %v362 = vadd.f32 %v290, %v361
    %v363 = vpop.f32.mrf.mxu0
    %364 = vdwg.mxu0
    %v365 = vsel %vm225, %v362, -inf
    %366 = vmax.xlane.f32.xlu0 %v365
    %v367 = vpop.xlane.xlu0 %366
    %v368 = vsub.f32 %v362, %v367
    %v369 = vmul.f32 %v368, 1.442695
    %v370 = vpow.pop %v369
    %v371 = vsel %vm225, %v370, 0.0
    %372 = vadd.xlane.f32.xlu0 %v371
    %v373 = vpop.xlane.xlu0 %372
    %v374 = vlog2.pop %v373
    %v375 = vmul.f32 %v374, 0.6931472
    %v376 = vadd.f32 %v375, %v367
    %v377 = vsub.f32 %v362, %v376
    %378 = vst.msk [vmem:[#allocation8] sm:$0xff] %vm225, %v377
    // Predicated region
    $region34: #{tpu_custom_call.1} parent=1 // pred_check
      _
    $region35: #{tpu_custom_call.1} parent=1 // pred_check_branch
      %380 = sbr.rel (0) target = $region37
    $region36: #{tpu_custom_call.1} parent=1 // pred_region
      %s382 = ssub.s32 128, 128
      %383 = vsyncadd [#allocation4], %s382
      %s385 = sshll.u32 [#allocation8], 4
      %s386 = int_to_ptr.vmem [resolvable:$true] %s385
      %388 = dma.vmem_to_hbm [thread:$0]  %s386, 128, %s5, [#allocation4]
    $region37: #{tpu_custom_call.1} parent=1 // pred_fallthru
      _
    // Predicated region
    $region38: #{tpu_custom_call.1} parent=1 // pred_check
      _
    $region39: #{tpu_custom_call.1} parent=1 // pred_check_branch
      %390 = sbr.rel (0) target = $region41
    $region40: #{tpu_custom_call.1} parent=1 // pred_region
      %391 = dma.done [#allocation4], 128
    $region41: #{tpu_custom_call.1} parent=1 // pred_fallthru
      _
    %392 = vsyncpa [#allocation3], 1
    %393 = vsyncpa [#allocation6], 1
    %394 = vsyncpa [#allocation4], 1

</llo_original>
